<compile_context>
chip_gen: v5e
topology: v5e:2x2
jax: 0.10.0
libtpu: 0.0.40
codegen_flags: <defaults>
</compile_context>

<pallas_src>
import jax
import jax.numpy as jnp
from jax.experimental import pallas as pl
from jax.experimental.pallas import tpu as pltpu

TINY = 1e-5


def layernorm_kernel(a_ref, b_ref, o_ref):
    # TODO(synk): PyTorch computes the mean/std in float64; TPU has no f64
    # vector path, so statistics are computed in float32 instead.
    x = a_ref[...].astype(jnp.float32) + b_ref[...].astype(jnp.float32)
    mean = jnp.mean(x, axis=-1, keepdims=True)
    xm = x - mean                                  # computed once, reused below
    var = jnp.mean(xm * xm, axis=-1, keepdims=True)
    std = jnp.sqrt(var)
    inv = pl.reciprocal(std + TINY, approx=False)  # recip + multiply, not divide
    o_ref[...] = (xm * inv).astype(o_ref.dtype)


def _pick_rows_per_tile(R, H, in_itemsize, out_itemsize):
    """Pick the largest row tile fitting a conservative VMEM budget.

    Budget is sized against v7x's 64 MiB/TC (the smallest of v5e/v6e/v7x),
    accounting for double-buffering of the two inputs and the output.
    The grid is kept >= 2 steps whenever possible so v7x megacore can shard it.
    """
    VMEM_BUDGET = 40 * 1024 * 1024
    per_row = 2 * (2 * in_itemsize + out_itemsize) * H  # 2 bufs x (a + b + out)
    cap = max(8, (VMEM_BUDGET // per_row) // 8 * 8)
    rows = min(1024, cap)                                # large tiles: ~MB-scale DMAs
    if R >= 16:
        rows = min(rows, max(8, (R // 2) // 8 * 8))      # keep grid >= 2
    rows = max(8, (rows // 8) * 8)                       # f32 sublane multiple
    return rows, per_row


def layer_normalization(attention, old_embedding, *, rows_per_tile=None):
    """x = attention + old_embedding; normalize over last dim: (x-mean)/(std+tiny)."""
    assert attention.shape == old_embedding.shape
    B, S, H = attention.shape
    R = B * S

    # Output dtype follows the (promoted) input dtype instead of hard-coding f32.
    out_dtype = jnp.result_type(attention.dtype, old_embedding.dtype)
    in_itemsize = max(jnp.dtype(attention.dtype).itemsize,
                      jnp.dtype(old_embedding.dtype).itemsize)
    out_itemsize = jnp.dtype(out_dtype).itemsize

    if rows_per_tile is None:
        rows_per_tile, per_row = _pick_rows_per_tile(R, H, in_itemsize, out_itemsize)
    else:
        per_row = 2 * (2 * in_itemsize + out_itemsize) * H

    a2 = attention.reshape(R, H)
    b2 = old_embedding.reshape(R, H)

    # Pad the row count so the grid tiles evenly; padded rows are sliced off.
    n_tiles = -(-R // rows_per_tile)
    R_pad = n_tiles * rows_per_tile
    if R_pad != R:
        pad = R_pad - R
        a2 = jnp.pad(a2, ((0, pad), (0, 0)))
        b2 = jnp.pad(b2, ((0, pad), (0, 0)))

    # Explicit VMEM limit so large tiles are not rejected by the scoped default.
    vmem_limit = int(max(32 << 20,
                         min(100 << 20, per_row * rows_per_tile + (4 << 20))))

    out = pl.pallas_call(
        layernorm_kernel,
        out_shape=jax.ShapeDtypeStruct((R_pad, H), out_dtype),
        grid_spec=pltpu.PrefetchScalarGridSpec(
            num_scalar_prefetch=0,
            grid=(n_tiles,),
            in_specs=[
                pl.BlockSpec((rows_per_tile, H), lambda i: (i, 0)),
                pl.BlockSpec((rows_per_tile, H), lambda i: (i, 0)),
            ],
            out_specs=pl.BlockSpec((rows_per_tile, H), lambda i: (i, 0)),
        ),
        compiler_params=pltpu.CompilerParams(
            dimension_semantics=("parallel",),
            vmem_limit_bytes=vmem_limit,
        ),
    )(a2, b2)

    if R_pad != R:
        out = out[:R]
    return out.reshape(B, S, H)


if __name__ == "__main__":
    B, S, H = 2, 8, 128
    key = jax.random.PRNGKey(0)
    k1, k2 = jax.random.split(key)
    attention = jax.random.normal(k1, (B, S, H), dtype=jnp.float32)
    old_embedding = jax.random.normal(k2, (B, S, H), dtype=jnp.float32)

    y = layer_normalization(attention, old_embedding)
    jax.block_until_ready(y)

    # Pure-JAX reference check (float32 stats, matching the module's formula).
    x = attention + old_embedding
    mean = jnp.mean(x, axis=2, keepdims=True)
    std = jnp.sqrt(jnp.mean((x - mean) ** 2, axis=2, keepdims=True))
    ref = (x - mean) / (std + TINY)
    assert jnp.allclose(y, ref, atol=1e-5, rtol=1e-5), "mismatch vs reference"

    print("KERNEL_OK")
</pallas_src>

<mosaic_0001>
module attributes {stable_mosaic.version = 11 : i64} {
  func.func @layernorm_kernel(%arg0: i32, %arg1: memref<8x128xf32, #tpu.memory_space<vmem>>, %arg2: memref<8x128xf32, #tpu.memory_space<vmem>>, %arg3: memref<8x128xf32, #tpu.memory_space<vmem>>) attributes {dimension_semantics = [#tpu.dimension_semantics<parallel>], iteration_bounds = array<i64: 2>, scalar_prefetch = 0 : i64, scratch_operands = 0 : i64, tpu.core_type = #tpu.core_type<tc>, window_params = [{transform_indices = @transform_0, window_bounds = array<i64: 8, 128>}, {transform_indices = @transform_1, window_bounds = array<i64: 8, 128>}, {transform_indices = @transform_2, window_bounds = array<i64: 8, 128>}]} {
    %c0 = arith.constant 0 : index
    %c0_0 = arith.constant 0 : index
    %0 = vector.load %arg1[%c0, %c0_0] : memref<8x128xf32, #tpu.memory_space<vmem>>, vector<8x128xf32>
    %c0_1 = arith.constant 0 : index
    %c0_2 = arith.constant 0 : index
    %1 = vector.load %arg2[%c0_1, %c0_2] : memref<8x128xf32, #tpu.memory_space<vmem>>, vector<8x128xf32>
    %2 = arith.addf %0, %1 : vector<8x128xf32>
    %cst = arith.constant dense<0.000000e+00> : vector<8xf32>
    %3 = vector.multi_reduction <add>, %2, %cst [1] : vector<8x128xf32> to vector<8xf32>
    %4 = vector.shape_cast %3 : vector<8xf32> to vector<8x1xf32>
    %cst_3 = arith.constant 1.280000e+02 : f32
    %5 = vector.broadcast %cst_3 : f32 to vector<8x1xf32>
    %6 = arith.divf %4, %5 : vector<8x1xf32>
    %7 = vector.broadcast %6 : vector<8x1xf32> to vector<8x128xf32>
    %8 = arith.subf %2, %7 : vector<8x128xf32>
    %9 = arith.mulf %8, %8 : vector<8x128xf32>
    %cst_4 = arith.constant dense<0.000000e+00> : vector<8xf32>
    %10 = vector.multi_reduction <add>, %9, %cst_4 [1] : vector<8x128xf32> to vector<8xf32>
    %11 = vector.shape_cast %10 : vector<8xf32> to vector<8x1xf32>
    %cst_5 = arith.constant 1.280000e+02 : f32
    %12 = vector.broadcast %cst_5 : f32 to vector<8x1xf32>
    %13 = arith.divf %11, %12 : vector<8x1xf32>
    %14 = math.sqrt %13 : vector<8x1xf32>
    %cst_6 = arith.constant 9.99999974E-6 : f32
    %15 = vector.broadcast %cst_6 : f32 to vector<8x1xf32>
    %16 = arith.addf %14, %15 : vector<8x1xf32>
    %17 = tpu.reciprocal %16 : vector<8x1xf32> -> vector<8x1xf32>
    %18 = vector.broadcast %17 : vector<8x1xf32> to vector<8x128xf32>
    %19 = arith.mulf %8, %18 : vector<8x128xf32>
    %c0_7 = arith.constant 0 : index
    %c0_8 = arith.constant 0 : index
    %20 = vector.load %arg3[%c0_7, %c0_8] : memref<8x128xf32, #tpu.memory_space<vmem>>, vector<8x128xf32>
    tpu.vector_store %arg3[%c0_7, %c0_8], %19 {strides = array<i32>} : memref<8x128xf32, #tpu.memory_space<vmem>>, vector<8x128xf32>,
    return
  }
  func.func @transform_0(%arg0: i32) -> (i32, i32) {
    %c0_i32 = arith.constant 0 : i32
    %c0_i32_0 = arith.constant 0 : i32
    return %arg0, %c0_i32 : i32, i32
  }
  func.func @transform_1(%arg0: i32) -> (i32, i32) {
    %c0_i32 = arith.constant 0 : i32
    %c0_i32_0 = arith.constant 0 : i32
    return %arg0, %c0_i32 : i32, i32
  }
  func.func @transform_2(%arg0: i32) -> (i32, i32) {
    %c0_i32 = arith.constant 0 : i32
    %c0_i32_0 = arith.constant 0 : i32
    return %arg0, %c0_i32 : i32, i32
  }
}

</mosaic_0001>

<llo_original>
// kernel: tpu_custom_call.1
$region0: #{tpu_custom_call.1}
  #allocation0 [shape = 'u32[]', space=smem, size = 0x4, offset = 0x4, fixed_abs, tag = 'smem constant byte address 0x4 - core index']
  #allocation1 [shape = 'u32[72,128]{1,0:T(1,128)}', space=vmem, size = 0x9000, scoped, tag = 'internal scratch']
  %s0 = inlined_call_operand.hbm [shape: f32[16,128], index: 0, kind: input, shape index: {}]
  %s1 = inlined_call_operand.hbm [shape: f32[16,128], index: 1, kind: input, shape index: {}]
  %s2 = inlined_call_operand.hbm [shape: f32[16,128], index: 2, kind: output, shape index: {}]
  %s3 = sld [smem:[#allocation0]]
  $region49: #{tpu_custom_call.1} parent=0
    _
  %s5 = ssub.s32 1, %s3
  %s6 = scalar_select 0, %s5, %s3
  $region1: #{tpu_custom_call.1} parent=0
    #allocation2 [shape = 'u8[8192]{0}', space=vmem, size = 0x2000, scoped, tag = 'input window, operand 0']
    #allocation3 [shape = 's32[2]{0}', space=sflag, size = 0x8, scoped, tag = 'scoped memory for tpu_custom_call.1']
    #allocation4 [shape = 's32[2]{0}', space=sflag, size = 0x8, scoped, tag = 'scoped memory for tpu_custom_call.1']
    #allocation5 [shape = 'u8[8192]{0}', space=vmem, size = 0x2000, scoped, tag = 'input window, operand 1']
    #allocation6 [shape = 's32[2]{0}', space=sflag, size = 0x8, scoped, tag = 'scoped memory for tpu_custom_call.1']
    #allocation7 [shape = 'u8[8192]{0}', space=vmem, size = 0x2000, scoped, tag = 'output window, operand 0']
    %7 = vsyncpa [#allocation3], 0
    %s8 = scalar_lea.sflag [#allocation3], 1
    %9 = vsyncpa %s8, 0
    %10 = vsyncpa [#allocation6], 0
    %s11 = scalar_lea.sflag [#allocation6], 1
    %12 = vsyncpa %s11, 0
    %13 = vsyncpa [#allocation4], 0
    %s14 = scalar_lea.sflag [#allocation4], 1
    %15 = vsyncpa %s14, 0
    loop: start=0, step=1, limit=4
    $region2: #{tpu_custom_call.1} parent=1 // loop_pre_header
      _
    $region3: #{tpu_custom_call.1} parent=1 // loop_header
      %s17 = sphi 0, %s21
      %p18 = scmp.ge.s32.totalorder %s17, 4
      %s27 = sphi 0, %s29
      %s30 = sphi 0, %s27
      %s31 = sphi 0, %s30
      %s47 = sphi 0, %s31
      %s53 = sphi 0, %s55
      %s56 = sphi 0, %s53
      %s57 = sphi 0, %s56
      %s73 = sphi 0, %s57
      %s79 = sphi 0, %s81
      %s82 = sphi 0, %s79
      %s83 = sphi 0, %s82
      %s99 = sphi 0, %s83
    $region4: #{tpu_custom_call.1} parent=1 // loop_header_branch
      %20 = sbr.rel (%p18) target = $region8
    $region5: #{tpu_custom_call.1} parent=1 // loop_body
      %s22 = ssub.s32 %s17, 1
      %s23 = ssub.s32 %s17, 2
      %s24 = sadd.s32 %s17, 1
      %s25 = ssub.s32 %s17, %s24
      %p26 = scmp.eq.s32.totalorder %s25, 0
      %s28 = sadd.s32 %s27, 1
      %s29 = scalar_select %p26, %s27, %s28
      %p32 = pneg %p26
      %p33 = scmp.eq.s32.totalorder %s17, 1
      %p34 = por %p32, %p33
      %p35 = scmp.ne.s32.totalorder %s27, %s30
      %p36 = scmp.eq.s32.totalorder %s17, 0
      %p37 = por %p35, %p36
      %p38 = scmp.ne.s32.totalorder %s27, %s30
      %p39 = scmp.eq.s32.totalorder %s22, 1
      %p40 = por %p38, %p39
      %p41 = scmp.ne.s32.totalorder %s30, %s31
      %p42 = scmp.eq.s32.totalorder %s22, 0
      %p43 = por %p41, %p42
      %p44 = scmp.ne.s32.totalorder %s30, %s31
      %p45 = scmp.eq.s32.totalorder %s23, 1
      %p46 = por %p44, %p45
      %p48 = scmp.ne.s32.totalorder %s31, %s47
      %p49 = scmp.eq.s32.totalorder %s23, 0
      %p50 = por %p48, %p49
      %s51 = ssub.s32 %s17, %s24
      %p52 = scmp.eq.s32.totalorder %s51, 0
      %s54 = sadd.s32 %s53, 1
      %s55 = scalar_select %p52, %s53, %s54
      %p58 = pneg %p52
      %p59 = scmp.eq.s32.totalorder %s17, 1
      %p60 = por %p58, %p59
      %p61 = scmp.ne.s32.totalorder %s53, %s56
      %p62 = scmp.eq.s32.totalorder %s17, 0
      %p63 = por %p61, %p62
      %p64 = scmp.ne.s32.totalorder %s53, %s56
      %p65 = scmp.eq.s32.totalorder %s22, 1
      %p66 = por %p64, %p65
      %p67 = scmp.ne.s32.totalorder %s56, %s57
      %p68 = scmp.eq.s32.totalorder %s22, 0
      %p69 = por %p67, %p68
      %p70 = scmp.ne.s32.totalorder %s56, %s57
      %p71 = scmp.eq.s32.totalorder %s23, 1
      %p72 = por %p70, %p71
      %p74 = scmp.ne.s32.totalorder %s57, %s73
      %p75 = scmp.eq.s32.totalorder %s23, 0
      %p76 = por %p74, %p75
      %s77 = ssub.s32 %s17, %s24
      %p78 = scmp.eq.s32.totalorder %s77, 0
      %s80 = sadd.s32 %s79, 1
      %s81 = scalar_select %p78, %s79, %s80
      %p84 = pneg %p78
      %p85 = scmp.eq.s32.totalorder %s17, 1
      %p86 = por %p84, %p85
      %p87 = scmp.ne.s32.totalorder %s79, %s82
      %p88 = scmp.eq.s32.totalorder %s17, 0
      %p89 = por %p87, %p88
      %p90 = scmp.ne.s32.totalorder %s79, %s82
      %p91 = scmp.eq.s32.totalorder %s22, 1
      %p92 = por %p90, %p91
      %p93 = scmp.ne.s32.totalorder %s82, %s83
      %p94 = scmp.eq.s32.totalorder %s22, 0
      %p95 = por %p93, %p94
      %p96 = scmp.ne.s32.totalorder %s82, %s83
      %p97 = scmp.eq.s32.totalorder %s23, 1
      %p98 = por %p96, %p97
      %p100 = scmp.ne.s32.totalorder %s83, %s99
      %p101 = scmp.eq.s32.totalorder %s23, 0
      %p102 = por %p100, %p101
      %p103 = scmp.le.s32.totalorder 1, %s17
      %p104 = scmp.lt.s32.totalorder %s17, 3
      %p105 = pnand %p103, %p104
      %p106 = pneg %p105
      // Predicated region
      $region9: #{tpu_custom_call.1} parent=5 // pred_check
        _
      $region10: #{tpu_custom_call.1} parent=5 // pred_check_branch
        %108 = sbr.rel (%p105) target = $region12
      $region11: #{tpu_custom_call.1} parent=5 // pred_region
        %s109 = ssub.s32 %s17, 1
      $region12: #{tpu_custom_call.1} parent=5 // pred_fallthru
        _
      %p110 = scmp.lt.s32.totalorder %s17, 2
      // Predicated region
      $region13: #{tpu_custom_call.1} parent=5 // pred_check
        %p111 = pneg %p110
      $region14: #{tpu_custom_call.1} parent=5 // pred_check_branch
        %113 = sbr.rel (%p111) target = $region16
      $region15: #{tpu_custom_call.1} parent=5 // pred_region
        // Predicated region
        $region17: #{tpu_custom_call.1} parent=15 // pred_check
          %p114 = pneg %p37
        $region18: #{tpu_custom_call.1} parent=15 // pred_check_branch
          %116 = sbr.rel (%p114) target = $region20
        $region19: #{tpu_custom_call.1} parent=15 // pred_region
          %s117 = sand.u32 %s27, 1
          %s118 = scalar_lea.sflag [#allocation3], %s117
          %s119 = sand.u32 %s27, 1
          %s120 = smul.addr %s119, 8
          %s121 = scalar_lea.vmem [#allocation2], %s120
          %123 = vsyncadd %s118, 0
          %s124 = smul.addr %s17, 8
          %s125 = scalar_lea.hbm %s0, %s124
          %s127 = sshll.u32 %s125, 4
          %s128 = int_to_ptr.hbm [resolvable:$true] %s127
          %s129 = sshll.u32 %s121, 4
          %s130 = int_to_ptr.vmem [resolvable:$true] %s129
          %132 = dma.hbm_to_vmem [thread:$0]  %s128, 128, %s130, %s118
        $region20: #{tpu_custom_call.1} parent=15 // pred_fallthru
          _
        // Predicated region
        $region21: #{tpu_custom_call.1} parent=15 // pred_check
          %p133 = pneg %p63
        $region22: #{tpu_custom_call.1} parent=15 // pred_check_branch
          %135 = sbr.rel (%p133) target = $region24
        $region23: #{tpu_custom_call.1} parent=15 // pred_region
          %s136 = sand.u32 %s53, 1
          %s137 = scalar_lea.sflag [#allocation6], %s136
          %s138 = sand.u32 %s53, 1
          %s139 = smul.addr %s138, 8
          %s140 = scalar_lea.vmem [#allocation5], %s139
          %142 = vsyncadd %s137, 0
          %s143 = smul.addr %s17, 8
          %s144 = scalar_lea.hbm %s1, %s143
          %s146 = sshll.u32 %s144, 4
          %s147 = int_to_ptr.hbm [resolvable:$true] %s146
          %s148 = sshll.u32 %s140, 4
          %s149 = int_to_ptr.vmem [resolvable:$true] %s148
          %151 = dma.hbm_to_vmem [thread:$0]  %s147, 128, %s149, %s137
        $region24: #{tpu_custom_call.1} parent=15 // pred_fallthru
          _
      $region16: #{tpu_custom_call.1} parent=5 // pred_fallthru
        _
      %p152 = scmp.le.s32.totalorder 1, %s17
      %p153 = scmp.lt.s32.totalorder %s17, 3
      %p154 = pnand %p152, %p153
      %p155 = pneg %p154
      // Predicated region
      $region25: #{tpu_custom_call.1} parent=5 // pred_check
        _
      $region26: #{tpu_custom_call.1} parent=5 // pred_check_branch
        %157 = sbr.rel (%p154) target = $region28
      $region27: #{tpu_custom_call.1} parent=5 // pred_region
        %s158 = ssub.s32 %s17, 1
        %s159 = sand.u32 %s30, 1
        %s160 = scalar_lea.sflag [#allocation3], %s159
        %s161 = sand.u32 %s30, 1
        %s162 = smul.addr %s161, 8
        %s163 = scalar_lea.vmem [#allocation2], %s162
        // Predicated region
        $region29: #{tpu_custom_call.1} parent=27 // pred_check
          %p164 = pneg %p43
        $region30: #{tpu_custom_call.1} parent=27 // pred_check_branch
          %166 = sbr.rel (%p164) target = $region32
        $region31: #{tpu_custom_call.1} parent=27 // pred_region
          %168 = dma.done %s160, 128
        $region32: #{tpu_custom_call.1} parent=27 // pred_fallthru
          _
        %s169 = sand.u32 %s56, 1
        %s170 = scalar_lea.sflag [#allocation6], %s169
        %s171 = sand.u32 %s56, 1
        %s172 = smul.addr %s171, 8
        %s173 = scalar_lea.vmem [#allocation5], %s172
        // Predicated region
        $region33: #{tpu_custom_call.1} parent=27 // pred_check
          %p174 = pneg %p69
        $region34: #{tpu_custom_call.1} parent=27 // pred_check_branch
          %176 = sbr.rel (%p174) target = $region36
        $region35: #{tpu_custom_call.1} parent=27 // pred_region
          %178 = dma.done %s170, 128
        $region36: #{tpu_custom_call.1} parent=27 // pred_fallthru
          _
        %s179 = sand.u32 %s30, 1
        %s180 = scalar_lea.sflag [#allocation3], %s179
        %s181 = sand.u32 %s30, 1
        %s182 = smul.addr %s181, 8
        %s183 = scalar_lea.vmem [#allocation2], %s182
        %p184 = pneg %p43
        %p185 = pneg %p40
        %s186 = sand.u32 %s56, 1
        %s187 = scalar_lea.sflag [#allocation6], %s186
        %s188 = sand.u32 %s56, 1
        %s189 = smul.addr %s188, 8
        %s190 = scalar_lea.vmem [#allocation5], %s189
        %p191 = pneg %p69
        %p192 = pneg %p66
        %p193 = pneg %p95
        %p194 = pneg %p92
        %s195 = sand.u32 %s82, 1
        %s196 = scalar_lea.sflag [#allocation4], %s195
        %s197 = sand.u32 %s82, 1
        %s198 = smul.addr %s197, 8
        %s199 = scalar_lea.vmem [#allocation7], %s198
        %v200 = vld [vmem:[%s163] sm:$0xff]
        %v201 = vld [vmem:[%s173] sm:$0xff]
        %v202 = vadd.f32 %v200, %v201
        %203 = vadd.xlane.f32.xlu0 %v202
        %v204 = vpop.xlane.xlu0 %203
        %v205 = vrcp.pop 128.0
        %v206 = vmul.f32 128.0, %v205
        %v207 = vsub.f32 1.0, %v206
        %v208 = vmul.f32 %v205, %v207
        %v209 = vadd.f32 %v205, %v208
        %vm210 = vweird.f32 %v205
        %v211 = vsel %vm210, %v205, %v209
        %v212 = vmul.f32 %v204, %v211
        %v213 = vsub.f32 %v202, %v212
        %v214 = vmul.f32 %v213, %v213
        %215 = vadd.xlane.f32.xlu0 %v214
        %v216 = vpop.xlane.xlu0 %215
        %v217 = vmul.f32 %v216, %v211
        %v218 = vrsqrt.pop %v217
        %v219 = vmul.f32 %v218, %v217
        %v220 = vmul.f32 %v219, %v218
        %v221 = vmul.f32 0.5, %v220
        %v222 = vsub.f32 1.5, %v221
        %v223 = vmul.f32 %v218, %v222
        %v224 = vmul.f32 %v217, %v223
        %vm225 = vcmp.eq.f32.partialorder %v217, inf
        %v226 = vsel %vm225, %v217, %v224
        %vm227 = vcmp.eq.f32.partialorder %v217, 0.0
        %v228 = vand.u32 %v217, 2147483648
        %v229 = vsel %vm227, %v228, %v226
        %v230 = vadd.f32 %v229, 1e-05
        %v231 = vrcp.pop %v230
        %v232 = vmul.f32 %v230, %v231
        %v233 = vsub.f32 1.0, %v232
        %v234 = vmul.f32 %v231, %v233
        %v235 = vadd.f32 %v231, %v234
        %vm236 = vweird.f32 %v230
        %vm237 = vweird.f32 %v231
        %vm238 = vmor %vm236, %vm237
        %v239 = vsel %vm238, %v231, %v235
        %v240 = vand.u32 2147483647, %v230
        %vm241 = vcmp.eq.f32.partialorder %v240, 8.507059e+37
        %v242 = vand.u32 %v230, 2147483648
        %v243 = vor.u32 1.1754944e-38, %v242
        %v244 = vsel %vm241, %v243, %v239
        %v245 = vmul.f32 %v213, %v244
        %246 = vst [vmem:[%s199] sm:$0xff] %v245
        %s247 = sand.u32 %s82, 1
        %s248 = scalar_lea.sflag [#allocation4], %s247
        %s249 = sand.u32 %s82, 1
        %s250 = smul.addr %s249, 8
        %s251 = scalar_lea.vmem [#allocation7], %s250
        // Predicated region
        $region37: #{tpu_custom_call.1} parent=27 // pred_check
          %p252 = pneg %p92
        $region38: #{tpu_custom_call.1} parent=27 // pred_check_branch
          %254 = sbr.rel (%p252) target = $region40
        $region39: #{tpu_custom_call.1} parent=27 // pred_region
          %256 = vsyncadd %s248, 0
          %s257 = smul.addr %s22, 8
          %s258 = scalar_lea.hbm %s2, %s257
          %s260 = sshll.u32 %s251, 4
          %s261 = int_to_ptr.vmem [resolvable:$true] %s260
          %s262 = sshll.u32 %s258, 4
          %s263 = int_to_ptr.hbm [resolvable:$true] %s262
          %265 = dma.vmem_to_hbm [thread:$0]  %s261, 128, %s263, %s248
        $region40: #{tpu_custom_call.1} parent=27 // pred_fallthru
          _
      $region28: #{tpu_custom_call.1} parent=5 // pred_fallthru
        _
      %p266 = scmp.le.s32.totalorder 2, %s17
      // Predicated region
      $region41: #{tpu_custom_call.1} parent=5 // pred_check
        %p267 = pneg %p266
      $region42: #{tpu_custom_call.1} parent=5 // pred_check_branch
        %269 = sbr.rel (%p267) target = $region44
      $region43: #{tpu_custom_call.1} parent=5 // pred_region
        %s270 = ssub.s32 %s17, 2
        // Predicated region
        $region45: #{tpu_custom_call.1} parent=43 // pred_check
          %p271 = pneg %p98
        $region46: #{tpu_custom_call.1} parent=43 // pred_check_branch
          %273 = sbr.rel (%p271) target = $region48
        $region47: #{tpu_custom_call.1} parent=43 // pred_region
          %s274 = sand.u32 %s83, 1
          %s275 = scalar_lea.sflag [#allocation4], %s274
          %s276 = sand.u32 %s83, 1
          %s277 = smul.addr %s276, 8
          %s278 = scalar_lea.vmem [#allocation7], %s277
          %280 = dma.done %s275, 128
        $region48: #{tpu_custom_call.1} parent=43 // pred_fallthru
          _
      $region44: #{tpu_custom_call.1} parent=5 // pred_fallthru
        _
    $region6: #{tpu_custom_call.1} parent=1 // loop_footer
      %s21 = sadd.s32 1, %s17
    $region7: #{tpu_custom_call.1} parent=1 // loop_footer_branch
      %16 = sbr.rel target = $region3
    $region8: #{tpu_custom_call.1} parent=1 // loop_exit
      _
    %281 = vsyncpa [#allocation3], 1
    %s282 = scalar_lea.sflag [#allocation3], 1
    %283 = vsyncpa %s282, 1
    %284 = vsyncpa [#allocation6], 1
    %s285 = scalar_lea.sflag [#allocation6], 1
    %286 = vsyncpa %s285, 1
    %287 = vsyncpa [#allocation4], 1
    %s288 = scalar_lea.sflag [#allocation4], 1
    %289 = vsyncpa %s288, 1

</llo_original>
